<compile_context>
chip_gen: v7x
topology: tpu7x:2x2x1
jax: 0.10.0
libtpu: 0.0.40
codegen_flags: <defaults>
</compile_context>

<pallas_src>
import functools

import jax
import jax.numpy as jnp
from jax.experimental import pallas as pl
from jax.experimental.pallas import tpu as pltpu

HIDDEN = 64            # per-head hidden width (PyTorch module uses 64)
H2 = 2 * HIDDEN        # fused (actor|critic) width == 128 lanes
NEG_BIG = -1e30        # finite mask fill; exp(NEG_BIG - m) underflows to 0


def _round_up(x, m):
    return (x + m - 1) // m * m


def _choose_tile_b(B):
    """Batch tile: big (amortize ~0.35us/step + DMA descriptor overhead),
    dividing B exactly when possible (no wrapper pad), and keeping >= 2 grid
    steps when B is large enough so the 'parallel' axis shards across v7x's
    two TensorCores. Capped at 1024 so VMEM stays trivial on v5e/v6e/v7x."""
    if B <= 8:
        return _round_up(max(B, 1), 8)
    for t in (1024, 512, 256, 128):                    # exact divide, >= 2 steps
        if B % t == 0 and B // t >= 2:
            return t
    for t in (1024, 512, 256, 128, 64, 32, 16, 8):     # exact divide, 1 step ok
        if B % t == 0:
            return t
    return 128 if B >= 128 else _round_up(B, 8)        # ragged: pad fallback


def _policy_kernel(obs_ref, p_ref, out_ref, *, obs_dim_p, action_dim,
                   matmul_dtype):
    """Fused actor+critic forward for one batch tile.

    obs_ref : [TILE_B, obs_dim_p]        (obs_dim zero-padded to multiple of 8)
    p_ref   : [obs_dim_p + 2*H2 + 24, H2] packed weights/biases (f32)
    out_ref : [TILE_B, H2]  lanes 0..A-1 = action_probs, lane A = value
    """
    A = action_dim
    x = obs_ref[...].astype(matmul_dtype)

    # Static, sublane-aligned views into the packed parameter blob.
    o_w1 = 0
    o_w2 = o_w1 + obs_dim_p
    o_w3 = o_w2 + H2
    o_b = o_w3 + H2
    # Matmul operands in matmul_dtype (bf16 -> native MXU rate); f32 accumulate.
    w1 = p_ref[o_w1:o_w1 + obs_dim_p, :].astype(matmul_dtype)   # [obs_dim_p,128]
    w2 = p_ref[o_w2:o_w2 + H2, :].astype(matmul_dtype)          # [128,128]
    w3 = p_ref[o_w3:o_w3 + H2, :].astype(matmul_dtype)          # [128,128]
    # Biases stay f32; rows are 8-sublane-aligned within the blob.
    b1 = p_ref[o_b + 0:o_b + 1, :]                               # [1,128]
    b2 = p_ref[o_b + 8:o_b + 9, :]
    b3 = p_ref[o_b + 16:o_b + 17, :]

    # Fused actor|critic trunk: 3 matmuls, 2 tanh (all activations f32).
    h = jnp.tanh(jnp.dot(x, w1, preferred_element_type=jnp.float32) + b1)
    h = jnp.tanh(jnp.dot(h.astype(matmul_dtype), w2,
                         preferred_element_type=jnp.float32) + b2)
    y = jnp.dot(h.astype(matmul_dtype), w3,
                preferred_element_type=jnp.float32) + b3         # [TILE_B, 128]
    # y lanes: [0, A) = actor logits, A = critic value, (A, 128) = zeros.

    # Masked, numerically stable softmax over the logit lanes only.
    lane = jax.lax.broadcasted_iota(jnp.int32, y.shape, 1)
    is_logit = lane < A
    lm = jnp.where(is_logit, y, jnp.float32(NEG_BIG))
    m = jnp.max(lm, axis=-1, keepdims=True)
    e = jnp.exp(lm - m)                     # masked lanes underflow to exactly 0
    denom = jnp.sum(e, axis=-1, keepdims=True)
    probs = e * pl.reciprocal(denom, approx=False)   # exact (1e-5 tolerance)

    # Single lane-dense store: probs in lanes [0, A), value in lane A, rest 0.
    out_ref[...] = (probs + jnp.where(lane == A, y, 0.0)).astype(out_ref.dtype)


def pack_params(params, obs_dim, action_dim, hidden=HIDDEN):
    """Pack the 12 weight/bias tensors into a single [R, 128] f32 blob.

    Row layout (all blocks 8-row aligned):
      [0, obs_dim_p)                     W1 = [aw1 | cw1]   (zero-padded rows)
      [obs_dim_p, obs_dim_p+128)         W2 = blockdiag(aw2, cw2)
      [obs_dim_p+128, obs_dim_p+256)     W3 = blockdiag(aw3, cw3) lane-padded
      [obs_dim_p+256, obs_dim_p+280)     rows o_b / o_b+8 / o_b+16 = b1, b2, b3
    """
    A = action_dim
    assert 1 <= A <= 127, "value lane / aw3 packing require 1 <= action_dim <= 127"
    obs_dim_p = _round_up(obs_dim, 8)
    f32 = jnp.float32

    w1 = jnp.concatenate([params["aw1"], params["cw1"]], axis=1)       # [obs,128]
    if obs_dim_p != obs_dim:
        w1 = jnp.concatenate([w1, jnp.zeros((obs_dim_p - obs_dim, H2), f32)], 0)

    zhh = jnp.zeros((hidden, hidden), f32)
    w2 = jnp.concatenate(
        [jnp.concatenate([params["aw2"], zhh], axis=1),
         jnp.concatenate([zhh, params["cw2"]], axis=1)], axis=0)        # [128,128]

    w3 = jnp.zeros((H2, H2), f32)
    w3 = w3.at[:hidden, :A].set(params["aw3"])
    w3 = w3.at[hidden:, A:A + 1].set(params["cw3"])                     # [128,128]

    b1 = jnp.concatenate([params["ab1"], params["cb1"]], axis=1)        # [1,128]
    b2 = jnp.concatenate([params["ab2"], params["cb2"]], axis=1)        # [1,128]
    b3 = jnp.zeros((1, H2), f32)
    b3 = b3.at[:, :A].set(params["ab3"])
    b3 = b3.at[:, A:A + 1].set(params["cb3"])

    bias_block = jnp.zeros((24, H2), f32)                # 8-row aligned bias rows
    bias_block = bias_block.at[0:1].set(b1).at[8:9].set(b2).at[16:17].set(b3)

    return jnp.concatenate([w1, w2, w3, bias_block], axis=0)            # [R,128]


def policy_network_forward(obs, packed, action_dim, *,
                           matmul_dtype=jnp.bfloat16):
    """Returns (value [B, 1], action_probs [B, action_dim])."""
    B, obs_dim = obs.shape
    assert 1 <= action_dim <= 127, "value lane requires 1 <= action_dim <= 127"
    obs_dim_p = _round_up(obs_dim, 8)
    if obs_dim_p != obs_dim:
        obs = jnp.pad(obs, ((0, 0), (0, obs_dim_p - obs_dim)))

    # Batch tiling: large lane-dense tiles, pipelined over a parallel grid axis.
    tile_b = _choose_tile_b(B)
    b_pad = _round_up(B, tile_b)
    if b_pad != B:   # only hit for ragged batches (tile_b is chosen to divide B)
        obs = jnp.pad(obs, ((0, b_pad - B), (0, 0)))
    grid = (b_pad // tile_b,)

    kernel = functools.partial(_policy_kernel,
                               obs_dim_p=obs_dim_p,
                               action_dim=action_dim,
                               matmul_dtype=matmul_dtype)

    out = pl.pallas_call(
        kernel,
        out_shape=jax.ShapeDtypeStruct((b_pad, H2), jnp.float32),
        grid=grid,
        in_specs=[
            # obs tile pipelines over the batch grid axis
            pl.BlockSpec((tile_b, obs_dim_p), lambda i: (i, 0)),
            # packed weights: constant block index -> single DMA, VMEM-resident
            pl.BlockSpec(packed.shape, lambda i: (0, 0)),
        ],
        out_specs=pl.BlockSpec((tile_b, H2), lambda i: (i, 0)),
        compiler_params=pltpu.CompilerParams(
            # batch axis is independent -> shards across the 2 TCs on v7x
            dimension_semantics=("parallel",)),
    )(obs, packed)

    value = out[:B, action_dim:action_dim + 1]
    probs = out[:B, :action_dim]
    return value, probs


def init_params(key, obs_dim, action_dim, hidden=HIDDEN):
    """PyTorch nn.Linear-style init (uniform +-1/sqrt(fan_in)); W as [in,out]."""
    keys = jax.random.split(key, 12)

    def linear(kw, kb, fan_in, fan_out):
        bound = 1.0 / jnp.sqrt(jnp.float32(fan_in))
        w = jax.random.uniform(kw, (fan_in, fan_out), jnp.float32, -bound, bound)
        b = jax.random.uniform(kb, (1, fan_out), jnp.float32, -bound, bound)
        return w, b

    aw1, ab1 = linear(keys[0], keys[1], obs_dim, hidden)
    aw2, ab2 = linear(keys[2], keys[3], hidden, hidden)
    aw3, ab3 = linear(keys[4], keys[5], hidden, action_dim)
    cw1, cb1 = linear(keys[6], keys[7], obs_dim, hidden)
    cw2, cb2 = linear(keys[8], keys[9], hidden, hidden)
    cw3, cb3 = linear(keys[10], keys[11], hidden, 1)
    return dict(aw1=aw1, ab1=ab1, aw2=aw2, ab2=ab2, aw3=aw3, ab3=ab3,
                cw1=cw1, cb1=cb1, cw2=cw2, cb2=cb2, cw3=cw3, cb3=cb3)


def _reference_forward(obs, p):
    x = obs.astype(jnp.float32)
    h = jnp.tanh(x @ p["aw1"] + p["ab1"])
    h = jnp.tanh(h @ p["aw2"] + p["ab2"])
    probs = jax.nn.softmax(h @ p["aw3"] + p["ab3"], axis=-1)
    g = jnp.tanh(x @ p["cw1"] + p["cb1"])
    g = jnp.tanh(g @ p["cw2"] + p["cb2"])
    v = g @ p["cw3"] + p["cb3"]
    return v, probs


if __name__ == "__main__":
    # Batched RL rollout-style call: B=256 -> 2 pipelined 128-row tiles
    # (exact divide -> no wrapper pad; 2 grid steps keep v7x megacore busy).
    B, OBS_DIM, ACTION_DIM = 256, 32, 8

    key = jax.random.PRNGKey(0)
    k_obs, k_params = jax.random.split(key)
    obs = jax.random.normal(k_obs, (B, OBS_DIM), jnp.float32)
    params = init_params(k_params, OBS_DIM, ACTION_DIM)
    packed = pack_params(params, OBS_DIM, ACTION_DIM)

    v_ref, p_ref = _reference_forward(obs, params)

    # Exact f32-matmul path: matches PyTorch f32 semantics to 1e-5.
    value, action_probs = policy_network_forward(
        obs, packed, ACTION_DIM, matmul_dtype=jnp.float32)
    jax.block_until_ready((value, action_probs))
    assert value.shape == (B, 1) and action_probs.shape == (B, ACTION_DIM)
    assert jnp.allclose(value, v_ref, atol=1e-5, rtol=1e-5)
    assert jnp.allclose(action_probs, p_ref, atol=1e-5, rtol=1e-5)
    assert jnp.allclose(jnp.sum(action_probs, axis=-1), 1.0, atol=1e-5)

    # Fast bf16-MXU path (f32 accumulation; biases/tanh/softmax in f32):
    # validated at bf16-level tolerance.
    v16, p16 = policy_network_forward(
        obs, packed, ACTION_DIM, matmul_dtype=jnp.bfloat16)
    jax.block_until_ready((v16, p16))
    assert v16.shape == (B, 1) and p16.shape == (B, ACTION_DIM)
    assert jnp.allclose(v16, v_ref, atol=5e-2, rtol=5e-2)
    assert jnp.allclose(p16, p_ref, atol=5e-2, rtol=5e-2)
    assert jnp.allclose(jnp.sum(p16, axis=-1), 1.0, atol=1e-5)

    # TODO(synk): `act()` (Categorical sampling + .item()) is host-side control
    # logic, not part of the tensor forward pass; left outside the kernel.
    print("KERNEL_OK")
</pallas_src>

<mosaic_0001>
module attributes {stable_mosaic.version = 11 : i64} {
  func.func @_policy_kernel(%arg0: i32, %arg1: memref<128x32xf32, #tpu.memory_space<vmem>>, %arg2: memref<312x128xf32, #tpu.memory_space<vmem>>, %arg3: memref<128x128xf32, #tpu.memory_space<vmem>>) attributes {dimension_semantics = [#tpu.dimension_semantics<parallel>], iteration_bounds = array<i64: 2>, scalar_prefetch = 0 : i64, scratch_operands = 0 : i64, tpu.core_type = #tpu.core_type<tc>, window_params = [{transform_indices = @transform_0, window_bounds = array<i64: 128, 32>}, {pipeline_mode = #tpu.pipeline_mode<synchronous>, transform_indices = @transform_1, window_bounds = array<i64: 312, 128>}, {transform_indices = @transform_2, window_bounds = array<i64: 128, 128>}]} {
    %c0 = arith.constant 0 : index
    %c0_0 = arith.constant 0 : index
    %0 = vector.load %arg1[%c0, %c0_0] : memref<128x32xf32, #tpu.memory_space<vmem>>, vector<128x32xf32>
    %c0_1 = arith.constant 0 : index
    %c0_2 = arith.constant 0 : index
    %1 = vector.load %arg2[%c0_1, %c0_2] : memref<312x128xf32, #tpu.memory_space<vmem>>, vector<32x128xf32>
    %c32 = arith.constant 32 : index
    %c0_3 = arith.constant 0 : index
    %2 = vector.load %arg2[%c32, %c0_3] : memref<312x128xf32, #tpu.memory_space<vmem>>, vector<128x128xf32>
    %c160 = arith.constant 160 : index
    %c0_4 = arith.constant 0 : index
    %3 = vector.load %arg2[%c160, %c0_4] : memref<312x128xf32, #tpu.memory_space<vmem>>, vector<128x128xf32>
    %c288 = arith.constant 288 : index
    %c0_5 = arith.constant 0 : index
    %4 = vector.load %arg2[%c288, %c0_5] : memref<312x128xf32, #tpu.memory_space<vmem>>, vector<1x128xf32>
    %c296 = arith.constant 296 : index
    %c0_6 = arith.constant 0 : index
    %5 = vector.load %arg2[%c296, %c0_6] : memref<312x128xf32, #tpu.memory_space<vmem>>, vector<1x128xf32>
    %c304 = arith.constant 304 : index
    %c0_7 = arith.constant 0 : index
    %6 = vector.load %arg2[%c304, %c0_7] : memref<312x128xf32, #tpu.memory_space<vmem>>, vector<1x128xf32>
    %cst = arith.constant dense<0.000000e+00> : vector<128x128xf32>
    %7 = tpu.matmul %0, %1, %cst {dimension_numbers = #tpu.dot_dimension_numbers<[1], [0], [0], [1], [0, 0, 1, 1], [], []>} : vector<128x32xf32>, vector<32x128xf32>, vector<128x128xf32> -> vector<128x128xf32>
    %8 = vector.broadcast %4 : vector<1x128xf32> to vector<128x128xf32>
    %9 = arith.addf %7, %8 : vector<128x128xf32>
    %10 = math.tanh %9 : vector<128x128xf32>
    %cst_8 = arith.constant dense<0.000000e+00> : vector<128x128xf32>
    %11 = tpu.matmul %10, %2, %cst_8 {dimension_numbers = #tpu.dot_dimension_numbers<[1], [0], [0], [1], [0, 0, 1, 1], [], []>} : vector<128x128xf32>, vector<128x128xf32>, vector<128x128xf32> -> vector<128x128xf32>
    %12 = vector.broadcast %5 : vector<1x128xf32> to vector<128x128xf32>
    %13 = arith.addf %11, %12 : vector<128x128xf32>
    %14 = math.tanh %13 : vector<128x128xf32>
    %cst_9 = arith.constant dense<0.000000e+00> : vector<128x128xf32>
    %15 = tpu.matmul %14, %3, %cst_9 {dimension_numbers = #tpu.dot_dimension_numbers<[1], [0], [0], [1], [0, 0, 1, 1], [], []>} : vector<128x128xf32>, vector<128x128xf32>, vector<128x128xf32> -> vector<128x128xf32>
    %16 = vector.broadcast %6 : vector<1x128xf32> to vector<128x128xf32>
    %17 = arith.addf %15, %16 : vector<128x128xf32>
    %18 = tpu.iota {dimensions = array<i32: 1>} : vector<128x128xi32>
    %c8_i32 = arith.constant 8 : i32
    %19 = vector.broadcast %c8_i32 : i32 to vector<128x128xi32>
    %20 = arith.cmpi slt, %18, %19 : vector<128x128xi32>
    %cst_10 = arith.constant -1.000000e+30 : f32
    %21 = vector.broadcast %cst_10 : f32 to vector<128x128xf32>
    %22 = arith.select %20, %17, %21 : vector<128x128xi1>, vector<128x128xf32>
    %cst_11 = arith.constant dense<0xFF800000> : vector<128xf32>
    %23 = vector.multi_reduction <maximumf>, %22, %cst_11 [1] : vector<128x128xf32> to vector<128xf32>
    %24 = vector.shape_cast %23 : vector<128xf32> to vector<128x1xf32>
    %25 = vector.broadcast %24 : vector<128x1xf32> to vector<128x128xf32>
    %26 = arith.subf %22, %25 : vector<128x128xf32>
    %27 = math.exp %26 : vector<128x128xf32>
    %cst_12 = arith.constant dense<0.000000e+00> : vector<128xf32>
    %28 = vector.multi_reduction <add>, %27, %cst_12 [1] : vector<128x128xf32> to vector<128xf32>
    %29 = vector.shape_cast %28 : vector<128xf32> to vector<128x1xf32>
    %30 = tpu.reciprocal %29 : vector<128x1xf32> -> vector<128x1xf32>
    %31 = vector.broadcast %30 : vector<128x1xf32> to vector<128x128xf32>
    %32 = arith.mulf %27, %31 : vector<128x128xf32>
    %c8_i32_13 = arith.constant 8 : i32
    %33 = vector.broadcast %c8_i32_13 : i32 to vector<128x128xi32>
    %34 = arith.cmpi eq, %18, %33 : vector<128x128xi32>
    %cst_14 = arith.constant 0.000000e+00 : f32
    %35 = vector.broadcast %cst_14 : f32 to vector<128x128xf32>
    %36 = arith.select %34, %17, %35 : vector<128x128xi1>, vector<128x128xf32>
    %37 = arith.addf %32, %36 : vector<128x128xf32>
    %c0_15 = arith.constant 0 : index
    %c0_16 = arith.constant 0 : index
    %38 = vector.load %arg3[%c0_15, %c0_16] : memref<128x128xf32, #tpu.memory_space<vmem>>, vector<128x128xf32>
    tpu.vector_store %arg3[%c0_15, %c0_16], %37 {strides = array<i32>} : memref<128x128xf32, #tpu.memory_space<vmem>>, vector<128x128xf32>,
    return
  }
  func.func @transform_0(%arg0: i32) -> (i32, i32) {
    %c0_i32 = arith.constant 0 : i32
    %c0_i32_0 = arith.constant 0 : i32
    return %arg0, %c0_i32 : i32, i32
  }
  func.func @transform_1(%arg0: i32) -> (i32, i32) {
    %c0_i32 = arith.constant 0 : i32
    %c0_i32_0 = arith.constant 0 : i32
    %c0_i32_1 = arith.constant 0 : i32
    return %c0_i32, %c0_i32_0 : i32, i32
  }
  func.func @transform_2(%arg0: i32) -> (i32, i32) {
    %c0_i32 = arith.constant 0 : i32
    %c0_i32_0 = arith.constant 0 : i32
    return %arg0, %c0_i32 : i32, i32
  }
}

</mosaic_0001>

<llo_original>
// kernel: tpu_custom_call.1
$region0: #{tpu_custom_call.1}
  #allocation0 [shape = 'u32[]', space=smem, size = 0x4, offset = 0x4, fixed_abs, tag = 'smem constant byte address 0x4 - core index']
  #allocation1 [shape = 'u32[144,128]{1,0:T(1,128)}', space=vmem, size = 0x12000, scoped, tag = 'internal scratch']
  %s0 = inlined_call_operand.vmem [shape: f32[256,32], index: 0, kind: input, shape index: {}]
  %s1 = inlined_call_operand.vmem [shape: f32[312,128], index: 1, kind: input, shape index: {}]
  %s2 = inlined_call_operand.hbm [shape: f32[256,128], index: 2, kind: output, shape index: {}]
  %s3 = sld [smem:[#allocation0]]
  $region41: #{tpu_custom_call.1} parent=0
    _
  %s5 = ssub.s32 1, %s3
  %s6 = scalar_select 0, %s5, %s3
  $region1: #{tpu_custom_call.1} parent=0
    #allocation2 [shape = 'u8[131072]{0}', space=vmem, size = 0x20000, scoped, tag = 'output window, operand 0']
    #allocation3 [shape = 's32[2]{0}', space=sflag, size = 0x8, scoped, tag = 'scoped memory for tpu_custom_call.1']
    %7 = vsyncpa [#allocation3], 0
    %s8 = scalar_lea.sflag [#allocation3], 1
    %9 = vsyncpa %s8, 0
    loop: start=0, step=1, limit=4
    $region2: #{tpu_custom_call.1} parent=1 // loop_pre_header
      _
    $region3: #{tpu_custom_call.1} parent=1 // loop_header
      %s11 = sphi 0, %s15
      %p12 = scmp.ge.s32.totalorder %s11, 4
      %s21 = sphi 0, %s23
      %s24 = sphi 0, %s21
      %s25 = sphi 0, %s24
      %s41 = sphi 0, %s25
      %s45 = sphi 0, %s45
      %s47 = sphi 0, %s45
      %s48 = sphi 0, %s47
      %s62 = sphi 0, %s48
      %s68 = sphi 0, %s70
      %s71 = sphi 0, %s68
      %s72 = sphi 0, %s71
      %s88 = sphi 0, %s72
    $region4: #{tpu_custom_call.1} parent=1 // loop_header_branch
      %14 = sbr.rel (%p12) target = $region8
    $region5: #{tpu_custom_call.1} parent=1 // loop_body
      %s16 = ssub.s32 %s11, 1
      %s17 = ssub.s32 %s11, 2
      %s18 = sadd.s32 %s11, 1
      %s19 = ssub.s32 %s11, %s18
      %p20 = scmp.eq.s32.totalorder %s19, 0
      %s22 = sadd.s32 %s21, 1
      %s23 = scalar_select %p20, %s21, %s22
      %p26 = pneg %p20
      %p27 = scmp.eq.s32.totalorder %s11, 1
      %p28 = por %p26, %p27
      %p29 = scmp.ne.s32.totalorder %s21, %s24
      %p30 = scmp.eq.s32.totalorder %s11, 0
      %p31 = por %p29, %p30
      %p32 = scmp.ne.s32.totalorder %s21, %s24
      %p33 = scmp.eq.s32.totalorder %s16, 1
      %p34 = por %p32, %p33
      %p35 = scmp.ne.s32.totalorder %s24, %s25
      %p36 = scmp.eq.s32.totalorder %s16, 0
      %p37 = por %p35, %p36
      %p38 = scmp.ne.s32.totalorder %s24, %s25
      %p39 = scmp.eq.s32.totalorder %s17, 1
      %p40 = por %p38, %p39
      %p42 = scmp.ne.s32.totalorder %s25, %s41
      %p43 = scmp.eq.s32.totalorder %s17, 0
      %p44 = por %p42, %p43
      %s46 = sadd.s32 %s45, 1
      %p49 = scmp.eq.s32.totalorder %s11, 1
      %p50 = scmp.ne.s32.totalorder %s45, %s47
      %p51 = scmp.eq.s32.totalorder %s11, 0
      %p52 = por %p50, %p51
      %p53 = scmp.ne.s32.totalorder %s45, %s47
      %p54 = scmp.eq.s32.totalorder %s16, 1
      %p55 = por %p53, %p54
      %p56 = scmp.ne.s32.totalorder %s47, %s48
      %p57 = scmp.eq.s32.totalorder %s16, 0
      %p58 = por %p56, %p57
      %p59 = scmp.ne.s32.totalorder %s47, %s48
      %p60 = scmp.eq.s32.totalorder %s17, 1
      %p61 = por %p59, %p60
      %p63 = scmp.ne.s32.totalorder %s48, %s62
      %p64 = scmp.eq.s32.totalorder %s17, 0
      %p65 = por %p63, %p64
      %s66 = ssub.s32 %s11, %s18
      %p67 = scmp.eq.s32.totalorder %s66, 0
      %s69 = sadd.s32 %s68, 1
      %s70 = scalar_select %p67, %s68, %s69
      %p73 = pneg %p67
      %p74 = scmp.eq.s32.totalorder %s11, 1
      %p75 = por %p73, %p74
      %p76 = scmp.ne.s32.totalorder %s68, %s71
      %p77 = scmp.eq.s32.totalorder %s11, 0
      %p78 = por %p76, %p77
      %p79 = scmp.ne.s32.totalorder %s68, %s71
      %p80 = scmp.eq.s32.totalorder %s16, 1
      %p81 = por %p79, %p80
      %p82 = scmp.ne.s32.totalorder %s71, %s72
      %p83 = scmp.eq.s32.totalorder %s16, 0
      %p84 = por %p82, %p83
      %p85 = scmp.ne.s32.totalorder %s71, %s72
      %p86 = scmp.eq.s32.totalorder %s17, 1
      %p87 = por %p85, %p86
      %p89 = scmp.ne.s32.totalorder %s72, %s88
      %p90 = scmp.eq.s32.totalorder %s17, 0
      %p91 = por %p89, %p90
      %p92 = scmp.le.s32.totalorder 1, %s11
      %p93 = scmp.lt.s32.totalorder %s11, 3
      %p94 = pnand %p92, %p93
      %p95 = pneg %p94
      // Predicated region
      $region9: #{tpu_custom_call.1} parent=5 // pred_check
        _
      $region10: #{tpu_custom_call.1} parent=5 // pred_check_branch
        %97 = sbr.rel (%p94) target = $region12
      $region11: #{tpu_custom_call.1} parent=5 // pred_region
        %s98 = ssub.s32 %s11, 1
        // Predicated region
        $region13: #{tpu_custom_call.1} parent=11 // pred_check
          %p99 = pneg %p58
        $region14: #{tpu_custom_call.1} parent=11 // pred_check_branch
          %101 = sbr.rel (%p99) target = $region16
        $region15: #{tpu_custom_call.1} parent=11 // pred_region
          _
        $region16: #{tpu_custom_call.1} parent=11 // pred_fallthru
          _
      $region12: #{tpu_custom_call.1} parent=5 // pred_fallthru
        _
      %p102 = scmp.lt.s32.totalorder %s11, 2
      // Predicated region
      $region17: #{tpu_custom_call.1} parent=5 // pred_check
        %p103 = pneg %p102
      $region18: #{tpu_custom_call.1} parent=5 // pred_check_branch
        %105 = sbr.rel (%p103) target = $region20
      $region19: #{tpu_custom_call.1} parent=5 // pred_region
        // Predicated region
        $region21: #{tpu_custom_call.1} parent=19 // pred_check
          %p106 = pneg %p31
        $region22: #{tpu_custom_call.1} parent=19 // pred_check_branch
          %108 = sbr.rel (%p106) target = $region24
        $region23: #{tpu_custom_call.1} parent=19 // pred_region
          %s109 = smul.u32 16, %s11
          %p110 = scmp.lt.s32.totalorder %s109, 31
          %s111 = scalar_select %p110, %s109, 31
          %s112 = smul.addr %s111, 8
          %s113 = scalar_lea.vmem %s0, %s112
          %s114 = smul.u32 16, %s11
        $region24: #{tpu_custom_call.1} parent=19 // pred_fallthru
          _
      $region20: #{tpu_custom_call.1} parent=5 // pred_fallthru
        _
      %p115 = scmp.le.s32.totalorder 1, %s11
      %p116 = scmp.lt.s32.totalorder %s11, 3
      %p117 = pnand %p115, %p116
      %p118 = pneg %p117
      // Predicated region
      $region25: #{tpu_custom_call.1} parent=5 // pred_check
        _
      $region26: #{tpu_custom_call.1} parent=5 // pred_check_branch
        %120 = sbr.rel (%p117) target = $region28
      $region27: #{tpu_custom_call.1} parent=5 // pred_region
        %s121 = ssub.s32 %s11, 1
        %s122 = smul.u32 16, %s16
        %p123 = scmp.lt.s32.totalorder %s122, 31
        %s124 = scalar_select %p123, %s122, 31
        %s125 = smul.addr %s124, 8
        %s126 = scalar_lea.vmem %s0, %s125
        %p127 = pneg %p37
        %p128 = pneg %p34
        %p129 = pneg %p58
        %p130 = pneg %p55
        %p131 = pneg %p84
        %p132 = pneg %p81
        %s133 = sand.u32 %s71, 1
        %s134 = scalar_lea.sflag [#allocation3], %s133
        %s135 = sand.u32 %s71, 1
        %s136 = smul.addr %s135, 128
        %s137 = scalar_lea.vmem [#allocation2], %s136
        %s138 = smul.u32 16, %s16
        %p139 = scmp.lt.s32.totalorder %s138, 31
        %s140 = scalar_select %p139, %s138, 31
        %s141 = smul.addr %s140, 8
        %s142 = scalar_lea.vmem %s0, %s141
        %s143 = smul.u32 16, %s16
        %s144 = smul.u32 16, %s16
        %v145 = vld [vmem:[%s142] sm:$0xff]
        %v146 = vld [vmem:[%s142 + $0x8] sm:$0xff]
        %v147 = vld [vmem:[%s142 + $0x10] sm:$0xff]
        %v148 = vld [vmem:[%s142 + $0x18] sm:$0xff]
        %v149 = vld [vmem:[%s142 + $0x20] sm:$0xff]
        %v150 = vld [vmem:[%s142 + $0x28] sm:$0xff]
        %v151 = vld [vmem:[%s142 + $0x30] sm:$0xff]
        %v152 = vld [vmem:[%s142 + $0x38] sm:$0xff]
        %v153 = vld [vmem:[%s142 + $0x40] sm:$0xff]
        %v154 = vld [vmem:[%s142 + $0x48] sm:$0xff]
        %v155 = vld [vmem:[%s142 + $0x50] sm:$0xff]
        %v156 = vld [vmem:[%s142 + $0x58] sm:$0xff]
        %v157 = vld [vmem:[%s142 + $0x60] sm:$0xff]
        %v158 = vld [vmem:[%s142 + $0x68] sm:$0xff]
        %v159 = vld [vmem:[%s142 + $0x70] sm:$0xff]
        %v160 = vld [vmem:[%s142 + $0x78] sm:$0xff]
        %v161 = vld [vmem:[%s1] sm:$0xff]
        %v162 = vld [vmem:[%s1 + $0x8] sm:$0xff]
        %v163 = vld [vmem:[%s1 + $0x10] sm:$0xff]
        %v164 = vld [vmem:[%s1 + $0x18] sm:$0xff]
        %v165 = vld [vmem:[%s1 + $0x20] sm:$0xff]
        %v166 = vld [vmem:[%s1 + $0x28] sm:$0xff]
        %v167 = vld [vmem:[%s1 + $0x30] sm:$0xff]
        %v168 = vld [vmem:[%s1 + $0x38] sm:$0xff]
        %v169 = vld [vmem:[%s1 + $0x40] sm:$0xff]
        %v170 = vld [vmem:[%s1 + $0x48] sm:$0xff]
        %v171 = vld [vmem:[%s1 + $0x50] sm:$0xff]
        %v172 = vld [vmem:[%s1 + $0x58] sm:$0xff]
        %v173 = vld [vmem:[%s1 + $0x60] sm:$0xff]
        %v174 = vld [vmem:[%s1 + $0x68] sm:$0xff]
        %v175 = vld [vmem:[%s1 + $0x70] sm:$0xff]
        %v176 = vld [vmem:[%s1 + $0x78] sm:$0xff]
        %v177 = vld [vmem:[%s1 + $0x80] sm:$0xff]
        %v178 = vld [vmem:[%s1 + $0x88] sm:$0xff]
        %v179 = vld [vmem:[%s1 + $0x90] sm:$0xff]
        %v180 = vld [vmem:[%s1 + $0x98] sm:$0xff]
        %v181 = vld [vmem:[%s1 + $0xa0] sm:$0xff]
        %v182 = vld [vmem:[%s1 + $0xa8] sm:$0xff]
        %v183 = vld [vmem:[%s1 + $0xb0] sm:$0xff]
        %v184 = vld [vmem:[%s1 + $0xb8] sm:$0xff]
        %v185 = vld [vmem:[%s1 + $0xc0] sm:$0xff]
        %v186 = vld [vmem:[%s1 + $0xc8] sm:$0xff]
        %v187 = vld [vmem:[%s1 + $0xd0] sm:$0xff]
        %v188 = vld [vmem:[%s1 + $0xd8] sm:$0xff]
        %v189 = vld [vmem:[%s1 + $0xe0] sm:$0xff]
        %v190 = vld [vmem:[%s1 + $0xe8] sm:$0xff]
        %v191 = vld [vmem:[%s1 + $0xf0] sm:$0xff]
        %v192 = vld [vmem:[%s1 + $0xf8] sm:$0xff]
        %v193 = vld [vmem:[%s1 + $0x100] sm:$0xff]
        %v194 = vld [vmem:[%s1 + $0x108] sm:$0xff]
        %v195 = vld [vmem:[%s1 + $0x110] sm:$0xff]
        %v196 = vld [vmem:[%s1 + $0x118] sm:$0xff]
        %v197 = vld [vmem:[%s1 + $0x120] sm:$0x1]
        %v198 = vld [vmem:[%s1 + $0x128] sm:$0x1]
        %v199 = vld [vmem:[%s1 + $0x130] sm:$0x1]
        %v200 = vlaneseq
        %v201 = vshrl.u32 %v200, 7
        %v202 = vsub.s32 0, %v201
        %v203 = vrot.slane %v197, %v202
        %vm204 = vcmask 261120
        %v206 = vsel %vm204, %v145, 0
        %v209 = vsel %vm204, %v146, 0
        %v212 = vsel %vm204, %v147, 0
        %v215 = vsel %vm204, %v148, 0
        %v218 = vsel %vm204, %v149, 0
        %v221 = vsel %vm204, %v150, 0
        %v224 = vsel %vm204, %v151, 0
        %v227 = vsel %vm204, %v152, 0
        %v230 = vsel %vm204, %v153, 0
        %v233 = vsel %vm204, %v154, 0
        %v236 = vsel %vm204, %v155, 0
        %v239 = vsel %vm204, %v156, 0
        %v242 = vsel %vm204, %v157, 0
        %v245 = vsel %vm204, %v158, 0
        %v248 = vsel %vm204, %v159, 0
        %v251 = vsel %vm204, %v160, 0
        %253 = vmatprep.subr.mxu0 0.0
        %254 = vmatpush1.msra.mxu0 %v161
        %255 = vmatprep.subr.mxu0 0.0
        %256 = vmatpush1.msra.mxu0 %v162
        %257 = vmatprep.subr.mxu0 0.0
        %258 = vmatpush1.msra.mxu0 %v163
        %259 = vmatprep.subr.mxu0 0.0
        %260 = vmatpush1.msra.mxu0 %v164
        %261 = vmatprep.subr.mxu0 0.0
        %262 = vmatpush1.msra.mxu0 0.0
        %263 = vmatprep.subr.mxu0 0.0
        %264 = vmatpush1.msra.mxu0 0.0
        %265 = vmatprep.subr.mxu0 0.0
        %266 = vmatpush1.msra.mxu0 0.0
        %267 = vmatprep.subr.mxu0 0.0
        %268 = vmatpush1.msra.mxu0 0.0
        %269 = vmatprep.subr.mxu0 0.0
        %270 = vmatpush1.msra.mxu0 0.0
        %271 = vmatprep.subr.mxu0 0.0
        %272 = vmatpush1.msra.mxu0 0.0
        %273 = vmatprep.subr.mxu0 0.0
        %274 = vmatpush1.msra.mxu0 0.0
        %275 = vmatprep.subr.mxu0 0.0
        %276 = vmatpush1.msra.mxu0 0.0
        %277 = vmatprep.subr.mxu0 0.0
        %278 = vmatpush1.msra.mxu0 0.0
        %279 = vmatprep.subr.mxu0 0.0
        %280 = vmatpush1.msra.mxu0 0.0
        %281 = vmatprep.subr.mxu0 0.0
        %282 = vmatpush1.msra.mxu0 0.0
        %283 = vmatprep.subr.mxu0 0.0
        %284 = vmatpush1.msra.mxu0 0.0
        %285 = vmatprep.subr.mxu0 0.0
        %286 = vmatpush1.msra.mxu0 0.0
        %287 = vmatprep.subr.mxu0 0.0
        %288 = vmatpush1.msra.mxu0 0.0
        %289 = vmatprep.subr.mxu0 0.0
        %290 = vmatpush1.msra.mxu0 0.0
        %291 = vmatprep.subr.mxu0 0.0
        %292 = vmatpush1.msra.mxu0 0.0
        %293 = vmatprep.subr.mxu0 0.0
        %294 = vmatpush1.msra.mxu0 0.0
        %295 = vmatprep.subr.mxu0 0.0
        %296 = vmatpush1.msra.mxu0 0.0
        %297 = vmatprep.subr.mxu0 0.0
        %298 = vmatpush1.msra.mxu0 0.0
        %299 = vmatprep.subr.mxu0 0.0
        %300 = vmatpush1.msra.mxu0 0.0
        %301 = vmatprep.subr.mxu0 0.0
        %302 = vmatpush1.msra.mxu0 0.0
        %303 = vmatprep.subr.mxu0 0.0
        %304 = vmatpush1.msra.mxu0 0.0
        %305 = vmatprep.subr.mxu0 0.0
        %306 = vmatpush1.msra.mxu0 0.0
        %307 = vmatprep.subr.mxu0 0.0
        %308 = vmatpush1.msra.mxu0 0.0
        %309 = vmatprep.subr.mxu0 0.0
        %310 = vmatpush1.msra.mxu0 0.0
        %311 = vmatprep.subr.mxu0 0.0
        %312 = vmatpush1.msra.mxu0 0.0
        %313 = vmatprep.subr.mxu0 0.0
        %314 = vmatpush1.msra.mxu0 0.0
        %315 = vmatprep.subr.mxu0 0.0
        %316 = vmatpush1.msra.mxu0 0.0
        %317 = vmatprep.mubr.f32.mxu0 0.0
        %318 = vmatmul.mubr.f32.gmra.mrb[0].mxu0 %v206
        %v319 = vpop.f32.mrb[0].mxu0
        %v320 = vadd.f32 %v203, %v319
        %v321 = vpop.f32.mrb[0].mxu0
        %322 = vmatprep.mubr.f32.mxu0 0.0
        %323 = vmatmul.mubr.f32.gmra.mrb[0].mxu0 %v209
        %v324 = vpop.f32.mrb[0].mxu0
        %v325 = vadd.f32 %v203, %v324
        %v326 = vpop.f32.mrb[0].mxu0
        %327 = vmatprep.mubr.f32.mxu0 0.0
        %328 = vmatmul.mubr.f32.gmra.mrb[0].mxu0 %v212
        %v329 = vpop.f32.mrb[0].mxu0
        %v330 = vadd.f32 %v203, %v329
        %v331 = vpop.f32.mrb[0].mxu0
        %332 = vmatprep.mubr.f32.mxu0 0.0
        %333 = vmatmul.mubr.f32.gmra.mrb[0].mxu0 %v215
        %v334 = vpop.f32.mrb[0].mxu0
        %v335 = vadd.f32 %v203, %v334
        %v336 = vpop.f32.mrb[0].mxu0
        %337 = vmatprep.mubr.f32.mxu0 0.0
        %338 = vmatmul.mubr.f32.gmra.mrb[0].mxu0 %v218
        %v339 = vpop.f32.mrb[0].mxu0
        %v340 = vadd.f32 %v203, %v339
        %v341 = vpop.f32.mrb[0].mxu0
        %342 = vmatprep.mubr.f32.mxu0 0.0
        %343 = vmatmul.mubr.f32.gmra.mrb[0].mxu0 %v221
        %v344 = vpop.f32.mrb[0].mxu0
        %v345 = vadd.f32 %v203, %v344
        %v346 = vpop.f32.mrb[0].mxu0
        %347 = vmatprep.mubr.f32.mxu0 0.0
        %348 = vmatmul.mubr.f32.gmra.mrb[0].mxu0 %v224
        %v349 = vpop.f32.mrb[0].mxu0
        %v350 = vadd.f32 %v203, %v349
        %v351 = vpop.f32.mrb[0].mxu0
        %352 = vmatprep.mubr.f32.mxu0 0.0
        %353 = vmatmul.mubr.f32.gmra.mrb[0].mxu0 %v227
        %v354 = vpop.f32.mrb[0].mxu0
        %v355 = vadd.f32 %v203, %v354
        %v356 = vpop.f32.mrb[0].mxu0
        %357 = vmatprep.mubr.f32.mxu0 0.0
        %358 = vmatmul.mubr.f32.gmra.mrb[0].mxu0 %v230
        %v359 = vpop.f32.mrb[0].mxu0
        %v360 = vadd.f32 %v203, %v359
        %v361 = vpop.f32.mrb[0].mxu0
        %362 = vmatprep.mubr.f32.mxu0 0.0
        %363 = vmatmul.mubr.f32.gmra.mrb[0].mxu0 %v233
        %v364 = vpop.f32.mrb[0].mxu0
        %v365 = vadd.f32 %v203, %v364
        %v366 = vpop.f32.mrb[0].mxu0
        %367 = vmatprep.mubr.f32.mxu0 0.0
        %368 = vmatmul.mubr.f32.gmra.mrb[0].mxu0 %v236
        %v369 = vpop.f32.mrb[0].mxu0
        %v370 = vadd.f32 %v203, %v369
        %v371 = vpop.f32.mrb[0].mxu0
        %372 = vmatprep.mubr.f32.mxu0 0.0
        %373 = vmatmul.mubr.f32.gmra.mrb[0].mxu0 %v239
        %v374 = vpop.f32.mrb[0].mxu0
        %v375 = vadd.f32 %v203, %v374
        %v376 = vpop.f32.mrb[0].mxu0
        %377 = vmatprep.mubr.f32.mxu0 0.0
        %378 = vmatmul.mubr.f32.gmra.mrb[0].mxu0 %v242
        %v379 = vpop.f32.mrb[0].mxu0
        %v380 = vadd.f32 %v203, %v379
        %v381 = vpop.f32.mrb[0].mxu0
        %382 = vmatprep.mubr.f32.mxu0 0.0
        %383 = vmatmul.mubr.f32.gmra.mrb[0].mxu0 %v245
        %v384 = vpop.f32.mrb[0].mxu0
        %v385 = vadd.f32 %v203, %v384
        %v386 = vpop.f32.mrb[0].mxu0
        %387 = vmatprep.mubr.f32.mxu0 0.0
        %388 = vmatmul.mubr.f32.gmra.mrb[0].mxu0 %v248
        %v389 = vpop.f32.mrb[0].mxu0
        %v390 = vadd.f32 %v203, %v389
        %v391 = vpop.f32.mrb[0].mxu0
        %392 = vmatprep.mubr.f32.mxu0 0.0
        %393 = vmatmul.mubr.f32.gmra.mrb[0].mxu0 %v251
        %v394 = vpop.f32.mrb[0].mxu0
        %v395 = vadd.f32 %v203, %v394
        %v396 = vpop.f32.mrb[0].mxu0
        %397 = vdwg.mxu0
        %v398 = vtanh.pop %v320
        %v399 = vtanh.pop %v325
        %v400 = vtanh.pop %v330
        %v401 = vtanh.pop %v335
        %v402 = vtanh.pop %v340
        %v403 = vtanh.pop %v345
        %v404 = vtanh.pop %v350
        %v405 = vtanh.pop %v355
        %v406 = vtanh.pop %v360
        %v407 = vtanh.pop %v365
        %v408 = vtanh.pop %v370
        %v409 = vtanh.pop %v375
        %v410 = vtanh.pop %v380
        %v411 = vtanh.pop %v385
        %v412 = vtanh.pop %v390
        %v413 = vtanh.pop %v395
        %v414 = vlaneseq
        %v415 = vshrl.u32 %v414, 7
        %v416 = vsub.s32 0, %v415
        %v417 = vrot.slane %v198, %v416
        %418 = vmatprep.subr.mxu0 0.0
        %419 = vmatpush1.msra.mxu0 %v165
        %420 = vmatprep.subr.mxu0 0.0
        %421 = vmatpush1.msra.mxu0 %v166
        %422 = vmatprep.subr.mxu0 0.0
        %423 = vmatpush1.msra.mxu0 %v167
        %424 = vmatprep.subr.mxu0 0.0
        %425 = vmatpush1.msra.mxu0 %v168
        %426 = vmatprep.subr.mxu0 0.0
        %427 = vmatpush1.msra.mxu0 %v169
        %428 = vmatprep.subr.mxu0 0.0
        %429 = vmatpush1.msra.mxu0 %v170
        %430 = vmatprep.subr.mxu0 0.0
        %431 = vmatpush1.msra.mxu0 %v171
        %432 = vmatprep.subr.mxu0 0.0
        %433 = vmatpush1.msra.mxu0 %v172
        %434 = vmatprep.subr.mxu0 0.0
        %435 = vmatpush1.msra.mxu0 %v173
        %436 = vmatprep.subr.mxu0 0.0
        %437 = vmatpush1.msra.mxu0 %v174
        %438 = vmatprep.subr.mxu0 0.0
        %439 = vmatpush1.msra.mxu0 %v175
        %440 = vmatprep.subr.mxu0 0.0
        %441 = vmatpush1.msra.mxu0 %v176
        %442 = vmatprep.subr.mxu0 0.0
        %443 = vmatpush1.msra.mxu0 %v177
        %444 = vmatprep.subr.mxu0 0.0
        %445 = vmatpush1.msra.mxu0 %v178
        %446 = vmatprep.subr.mxu0 0.0
        %447 = vmatpush1.msra.mxu0 %v179
        %448 = vmatprep.subr.mxu0 0.0
        %449 = vmatpush1.msra.mxu0 %v180
        %450 = vmatprep.subr.mxu0 0.0
        %451 = vmatpush1.msra.mxu0 0.0
        %452 = vmatprep.subr.mxu0 0.0
        %453 = vmatpush1.msra.mxu0 0.0
        %454 = vmatprep.subr.mxu0 0.0
        %455 = vmatpush1.msra.mxu0 0.0
        %456 = vmatprep.subr.mxu0 0.0
        %457 = vmatpush1.msra.mxu0 0.0
        %458 = vmatprep.subr.mxu0 0.0
        %459 = vmatpush1.msra.mxu0 0.0
        %460 = vmatprep.subr.mxu0 0.0
        %461 = vmatpush1.msra.mxu0 0.0
        %462 = vmatprep.subr.mxu0 0.0
        %463 = vmatpush1.msra.mxu0 0.0
        %464 = vmatprep.subr.mxu0 0.0
        %465 = vmatpush1.msra.mxu0 0.0
        %466 = vmatprep.subr.mxu0 0.0
        %467 = vmatpush1.msra.mxu0 0.0
        %468 = vmatprep.subr.mxu0 0.0
        %469 = vmatpush1.msra.mxu0 0.0
        %470 = vmatprep.subr.mxu0 0.0
        %471 = vmatpush1.msra.mxu0 0.0
        %472 = vmatprep.subr.mxu0 0.0
        %473 = vmatpush1.msra.mxu0 0.0
        %474 = vmatprep.subr.mxu0 0.0
        %475 = vmatpush1.msra.mxu0 0.0
        %476 = vmatprep.subr.mxu0 0.0
        %477 = vmatpush1.msra.mxu0 0.0
        %478 = vmatprep.subr.mxu0 0.0
        %479 = vmatpush1.msra.mxu0 0.0
        %480 = vmatprep.subr.mxu0 0.0
        %481 = vmatpush1.msra.mxu0 0.0
        %482 = vmatprep.mubr.f32.mxu0 0.0
        %483 = vmatmul.mubr.f32.gmra.mrb[0].mxu0 %v398
        %v484 = vpop.f32.mrb[0].mxu0
        %v485 = vadd.f32 %v417, %v484
        %v486 = vpop.f32.mrb[0].mxu0
        %487 = vmatprep.mubr.f32.mxu0 0.0
        %488 = vmatmul.mubr.f32.gmra.mrb[0].mxu0 %v399
        %v489 = vpop.f32.mrb[0].mxu0
        %v490 = vadd.f32 %v417, %v489
        %v491 = vpop.f32.mrb[0].mxu0
        %492 = vmatprep.mubr.f32.mxu0 0.0
        %493 = vmatmul.mubr.f32.gmra.mrb[0].mxu0 %v400
        %v494 = vpop.f32.mrb[0].mxu0
        %v495 = vadd.f32 %v417, %v494
        %v496 = vpop.f32.mrb[0].mxu0
        %497 = vmatprep.mubr.f32.mxu0 0.0
        %498 = vmatmul.mubr.f32.gmra.mrb[0].mxu0 %v401
        %v499 = vpop.f32.mrb[0].mxu0
        %v500 = vadd.f32 %v417, %v499
        %v501 = vpop.f32.mrb[0].mxu0
        %502 = vmatprep.mubr.f32.mxu0 0.0
        %503 = vmatmul.mubr.f32.gmra.mrb[0].mxu0 %v402
        %v504 = vpop.f32.mrb[0].mxu0
        %v505 = vadd.f32 %v417, %v504
        %v506 = vpop.f32.mrb[0].mxu0
        %507 = vmatprep.mubr.f32.mxu0 0.0
        %508 = vmatmul.mubr.f32.gmra.mrb[0].mxu0 %v403
        %v509 = vpop.f32.mrb[0].mxu0
        %v510 = vadd.f32 %v417, %v509
        %v511 = vpop.f32.mrb[0].mxu0
        %512 = vmatprep.mubr.f32.mxu0 0.0
        %513 = vmatmul.mubr.f32.gmra.mrb[0].mxu0 %v404
        %v514 = vpop.f32.mrb[0].mxu0
        %v515 = vadd.f32 %v417, %v514
        %v516 = vpop.f32.mrb[0].mxu0
        %517 = vmatprep.mubr.f32.mxu0 0.0
        %518 = vmatmul.mubr.f32.gmra.mrb[0].mxu0 %v405
        %v519 = vpop.f32.mrb[0].mxu0
        %v520 = vadd.f32 %v417, %v519
        %v521 = vpop.f32.mrb[0].mxu0
        %522 = vmatprep.mubr.f32.mxu0 0.0
        %523 = vmatmul.mubr.f32.gmra.mrb[0].mxu0 %v406
        %v524 = vpop.f32.mrb[0].mxu0
        %v525 = vadd.f32 %v417, %v524
        %v526 = vpop.f32.mrb[0].mxu0
        %527 = vmatprep.mubr.f32.mxu0 0.0
        %528 = vmatmul.mubr.f32.gmra.mrb[0].mxu0 %v407
        %v529 = vpop.f32.mrb[0].mxu0
        %v530 = vadd.f32 %v417, %v529
        %v531 = vpop.f32.mrb[0].mxu0
        %532 = vmatprep.mubr.f32.mxu0 0.0
        %533 = vmatmul.mubr.f32.gmra.mrb[0].mxu0 %v408
        %v534 = vpop.f32.mrb[0].mxu0
        %v535 = vadd.f32 %v417, %v534
        %v536 = vpop.f32.mrb[0].mxu0
        %537 = vmatprep.mubr.f32.mxu0 0.0
        %538 = vmatmul.mubr.f32.gmra.mrb[0].mxu0 %v409
        %v539 = vpop.f32.mrb[0].mxu0
        %v540 = vadd.f32 %v417, %v539
        %v541 = vpop.f32.mrb[0].mxu0
        %542 = vmatprep.mubr.f32.mxu0 0.0
        %543 = vmatmul.mubr.f32.gmra.mrb[0].mxu0 %v410
        %v544 = vpop.f32.mrb[0].mxu0
        %v545 = vadd.f32 %v417, %v544
        %v546 = vpop.f32.mrb[0].mxu0
        %547 = vmatprep.mubr.f32.mxu0 0.0
        %548 = vmatmul.mubr.f32.gmra.mrb[0].mxu0 %v411
        %v549 = vpop.f32.mrb[0].mxu0
        %v550 = vadd.f32 %v417, %v549
        %v551 = vpop.f32.mrb[0].mxu0
        %552 = vmatprep.mubr.f32.mxu0 0.0
        %553 = vmatmul.mubr.f32.gmra.mrb[0].mxu0 %v412
        %v554 = vpop.f32.mrb[0].mxu0
        %v555 = vadd.f32 %v417, %v554
        %v556 = vpop.f32.mrb[0].mxu0
        %557 = vmatprep.mubr.f32.mxu0 0.0
        %558 = vmatmul.mubr.f32.gmra.mrb[0].mxu0 %v413
        %v559 = vpop.f32.mrb[0].mxu0
        %v560 = vadd.f32 %v417, %v559
        %v561 = vpop.f32.mrb[0].mxu0
        %562 = vdwg.mxu0
        %v563 = vtanh.pop %v485
        %v564 = vtanh.pop %v490
        %v565 = vtanh.pop %v495
        %v566 = vtanh.pop %v500
        %v567 = vtanh.pop %v505
        %v568 = vtanh.pop %v510
        %v569 = vtanh.pop %v515
        %v570 = vtanh.pop %v520
        %v571 = vtanh.pop %v525
        %v572 = vtanh.pop %v530
        %v573 = vtanh.pop %v535
        %v574 = vtanh.pop %v540
        %v575 = vtanh.pop %v545
        %v576 = vtanh.pop %v550
        %v577 = vtanh.pop %v555
        %v578 = vtanh.pop %v560
        %v579 = vlaneseq
        %v580 = vshrl.u32 %v579, 7
        %v581 = vsub.s32 0, %v580
        %v582 = vrot.slane %v199, %v581
        %583 = vmatprep.subr.mxu0 0.0
        %584 = vmatpush1.msra.mxu0 %v181
        %585 = vmatprep.subr.mxu0 0.0
        %586 = vmatpush1.msra.mxu0 %v182
        %587 = vmatprep.subr.mxu0 0.0
        %588 = vmatpush1.msra.mxu0 %v183
        %589 = vmatprep.subr.mxu0 0.0
        %590 = vmatpush1.msra.mxu0 %v184
        %591 = vmatprep.subr.mxu0 0.0
        %592 = vmatpush1.msra.mxu0 %v185
        %593 = vmatprep.subr.mxu0 0.0
        %594 = vmatpush1.msra.mxu0 %v186
        %595 = vmatprep.subr.mxu0 0.0
        %596 = vmatpush1.msra.mxu0 %v187
        %597 = vmatprep.subr.mxu0 0.0
        %598 = vmatpush1.msra.mxu0 %v188
        %599 = vmatprep.subr.mxu0 0.0
        %600 = vmatpush1.msra.mxu0 %v189
        %601 = vmatprep.subr.mxu0 0.0
        %602 = vmatpush1.msra.mxu0 %v190
        %603 = vmatprep.subr.mxu0 0.0
        %604 = vmatpush1.msra.mxu0 %v191
        %605 = vmatprep.subr.mxu0 0.0
        %606 = vmatpush1.msra.mxu0 %v192
        %607 = vmatprep.subr.mxu0 0.0
        %608 = vmatpush1.msra.mxu0 %v193
        %609 = vmatprep.subr.mxu0 0.0
        %610 = vmatpush1.msra.mxu0 %v194
        %611 = vmatprep.subr.mxu0 0.0
        %612 = vmatpush1.msra.mxu0 %v195
        %613 = vmatprep.subr.mxu0 0.0
        %614 = vmatpush1.msra.mxu0 %v196
        %615 = vmatprep.subr.mxu0 0.0
        %616 = vmatpush1.msra.mxu0 0.0
        %617 = vmatprep.subr.mxu0 0.0
        %618 = vmatpush1.msra.mxu0 0.0
        %619 = vmatprep.subr.mxu0 0.0
        %620 = vmatpush1.msra.mxu0 0.0
        %621 = vmatprep.subr.mxu0 0.0
        %622 = vmatpush1.msra.mxu0 0.0
        %623 = vmatprep.subr.mxu0 0.0
        %624 = vmatpush1.msra.mxu0 0.0
        %625 = vmatprep.subr.mxu0 0.0
        %626 = vmatpush1.msra.mxu0 0.0
        %627 = vmatprep.subr.mxu0 0.0
        %628 = vmatpush1.msra.mxu0 0.0
        %629 = vmatprep.subr.mxu0 0.0
        %630 = vmatpush1.msra.mxu0 0.0
        %631 = vmatprep.subr.mxu0 0.0
        %632 = vmatpush1.msra.mxu0 0.0
        %633 = vmatprep.subr.mxu0 0.0
        %634 = vmatpush1.msra.mxu0 0.0
        %635 = vmatprep.subr.mxu0 0.0
        %636 = vmatpush1.msra.mxu0 0.0
        %637 = vmatprep.subr.mxu0 0.0
        %638 = vmatpush1.msra.mxu0 0.0
        %639 = vmatprep.subr.mxu0 0.0
        %640 = vmatpush1.msra.mxu0 0.0
        %641 = vmatprep.subr.mxu0 0.0
        %642 = vmatpush1.msra.mxu0 0.0
        %643 = vmatprep.subr.mxu0 0.0
        %644 = vmatpush1.msra.mxu0 0.0
        %645 = vmatprep.subr.mxu0 0.0
        %646 = vmatpush1.msra.mxu0 0.0
        %647 = vmatprep.mubr.f32.mxu0 0.0
        %648 = vmatmul.mubr.f32.gmra.mrb[0].mxu0 %v563
        %v649 = vpop.f32.mrb[0].mxu0
        %v650 = vadd.f32 %v582, %v649
        %v651 = vpop.f32.mrb[0].mxu0
        %652 = vmatprep.mubr.f32.mxu0 0.0
        %653 = vmatmul.mubr.f32.gmra.mrb[0].mxu0 %v564
        %v654 = vpop.f32.mrb[0].mxu0
        %v655 = vadd.f32 %v582, %v654
        %v656 = vpop.f32.mrb[0].mxu0
        %657 = vmatprep.mubr.f32.mxu0 0.0
        %658 = vmatmul.mubr.f32.gmra.mrb[0].mxu0 %v565
        %v659 = vpop.f32.mrb[0].mxu0
        %v660 = vadd.f32 %v582, %v659
        %v661 = vpop.f32.mrb[0].mxu0
        %662 = vmatprep.mubr.f32.mxu0 0.0
        %663 = vmatmul.mubr.f32.gmra.mrb[0].mxu0 %v566
        %v664 = vpop.f32.mrb[0].mxu0
        %v665 = vadd.f32 %v582, %v664
        %v666 = vpop.f32.mrb[0].mxu0
        %667 = vmatprep.mubr.f32.mxu0 0.0
        %668 = vmatmul.mubr.f32.gmra.mrb[0].mxu0 %v567
        %v669 = vpop.f32.mrb[0].mxu0
        %v670 = vadd.f32 %v582, %v669
        %v671 = vpop.f32.mrb[0].mxu0
        %672 = vmatprep.mubr.f32.mxu0 0.0
        %673 = vmatmul.mubr.f32.gmra.mrb[0].mxu0 %v568
        %v674 = vpop.f32.mrb[0].mxu0
        %v675 = vadd.f32 %v582, %v674
        %v676 = vpop.f32.mrb[0].mxu0
        %677 = vmatprep.mubr.f32.mxu0 0.0
        %678 = vmatmul.mubr.f32.gmra.mrb[0].mxu0 %v569
        %v679 = vpop.f32.mrb[0].mxu0
        %v680 = vadd.f32 %v582, %v679
        %v681 = vpop.f32.mrb[0].mxu0
        %682 = vmatprep.mubr.f32.mxu0 0.0
        %683 = vmatmul.mubr.f32.gmra.mrb[0].mxu0 %v570
        %v684 = vpop.f32.mrb[0].mxu0
        %v685 = vadd.f32 %v582, %v684
        %v686 = vpop.f32.mrb[0].mxu0
        %687 = vmatprep.mubr.f32.mxu0 0.0
        %688 = vmatmul.mubr.f32.gmra.mrb[0].mxu0 %v571
        %v689 = vpop.f32.mrb[0].mxu0
        %v690 = vadd.f32 %v582, %v689
        %v691 = vpop.f32.mrb[0].mxu0
        %692 = vmatprep.mubr.f32.mxu0 0.0
        %693 = vmatmul.mubr.f32.gmra.mrb[0].mxu0 %v572
        %v694 = vpop.f32.mrb[0].mxu0
        %v695 = vadd.f32 %v582, %v694
        %v696 = vpop.f32.mrb[0].mxu0
        %697 = vmatprep.mubr.f32.mxu0 0.0
        %698 = vmatmul.mubr.f32.gmra.mrb[0].mxu0 %v573
        %v699 = vpop.f32.mrb[0].mxu0
        %v700 = vadd.f32 %v582, %v699
        %v701 = vpop.f32.mrb[0].mxu0
        %702 = vmatprep.mubr.f32.mxu0 0.0
        %703 = vmatmul.mubr.f32.gmra.mrb[0].mxu0 %v574
        %v704 = vpop.f32.mrb[0].mxu0
        %v705 = vadd.f32 %v582, %v704
        %v706 = vpop.f32.mrb[0].mxu0
        %707 = vmatprep.mubr.f32.mxu0 0.0
        %708 = vmatmul.mubr.f32.gmra.mrb[0].mxu0 %v575
        %v709 = vpop.f32.mrb[0].mxu0
        %v710 = vadd.f32 %v582, %v709
        %v711 = vpop.f32.mrb[0].mxu0
        %712 = vmatprep.mubr.f32.mxu0 0.0
        %713 = vmatmul.mubr.f32.gmra.mrb[0].mxu0 %v576
        %v714 = vpop.f32.mrb[0].mxu0
        %v715 = vadd.f32 %v582, %v714
        %v716 = vpop.f32.mrb[0].mxu0
        %717 = vmatprep.mubr.f32.mxu0 0.0
        %718 = vmatmul.mubr.f32.gmra.mrb[0].mxu0 %v577
        %v719 = vpop.f32.mrb[0].mxu0
        %v720 = vadd.f32 %v582, %v719
        %v721 = vpop.f32.mrb[0].mxu0
        %722 = vmatprep.mubr.f32.mxu0 0.0
        %723 = vmatmul.mubr.f32.gmra.mrb[0].mxu0 %v578
        %v724 = vpop.f32.mrb[0].mxu0
        %v725 = vadd.f32 %v582, %v724
        %v726 = vpop.f32.mrb[0].mxu0
        %727 = vdwg.mxu0
        %v728 = vlaneseq
        %v729 = vand.u32 %v728, 127
        %vm730 = vcmp.lt.s32.totalorder %v729, 8
        %v731 = vsel %vm730, %v650, -1e+30
        %v732 = vsel %vm730, %v655, -1e+30
        %v733 = vsel %vm730, %v660, -1e+30
        %v734 = vsel %vm730, %v665, -1e+30
        %v735 = vsel %vm730, %v670, -1e+30
        %v736 = vsel %vm730, %v675, -1e+30
        %v737 = vsel %vm730, %v680, -1e+30
        %v738 = vsel %vm730, %v685, -1e+30
        %v739 = vsel %vm730, %v690, -1e+30
        %v740 = vsel %vm730, %v695, -1e+30
        %v741 = vsel %vm730, %v700, -1e+30
        %v742 = vsel %vm730, %v705, -1e+30
        %v743 = vsel %vm730, %v710, -1e+30
        %v744 = vsel %vm730, %v715, -1e+30
        %v745 = vsel %vm730, %v720, -1e+30
        %v746 = vsel %vm730, %v725, -1e+30
        %747 = vmax.xlane.f32.xlu0 %v731
        %v748 = vpop.xlane.xlu0 %747
        %749 = vmax.xlane.f32.xlu0 %v732
        %v750 = vpop.xlane.xlu0 %749
        %751 = vmax.xlane.f32.xlu0 %v733
        %v752 = vpop.xlane.xlu0 %751
        %753 = vmax.xlane.f32.xlu0 %v734
        %v754 = vpop.xlane.xlu0 %753
        %755 = vmax.xlane.f32.xlu0 %v735
        %v756 = vpop.xlane.xlu0 %755
        %757 = vmax.xlane.f32.xlu0 %v736
        %v758 = vpop.xlane.xlu0 %757
        %759 = vmax.xlane.f32.xlu0 %v737
        %v760 = vpop.xlane.xlu0 %759
        %761 = vmax.xlane.f32.xlu0 %v738
        %v762 = vpop.xlane.xlu0 %761
        %763 = vmax.xlane.f32.xlu0 %v739
        %v764 = vpop.xlane.xlu0 %763
        %765 = vmax.xlane.f32.xlu0 %v740
        %v766 = vpop.xlane.xlu0 %765
        %767 = vmax.xlane.f32.xlu0 %v741
        %v768 = vpop.xlane.xlu0 %767
        %769 = vmax.xlane.f32.xlu0 %v742
        %v770 = vpop.xlane.xlu0 %769
        %771 = vmax.xlane.f32.xlu0 %v743
        %v772 = vpop.xlane.xlu0 %771
        %773 = vmax.xlane.f32.xlu0 %v744
        %v774 = vpop.xlane.xlu0 %773
        %775 = vmax.xlane.f32.xlu0 %v745
        %v776 = vpop.xlane.xlu0 %775
        %777 = vmax.xlane.f32.xlu0 %v746
        %v778 = vpop.xlane.xlu0 %777
        %v779 = vsub.f32 %v731, %v748
        %v780 = vsub.f32 %v732, %v750
        %v781 = vsub.f32 %v733, %v752
        %v782 = vsub.f32 %v734, %v754
        %v783 = vsub.f32 %v735, %v756
        %v784 = vsub.f32 %v736, %v758
        %v785 = vsub.f32 %v737, %v760
        %v786 = vsub.f32 %v738, %v762
        %v787 = vsub.f32 %v739, %v764
        %v788 = vsub.f32 %v740, %v766
        %v789 = vsub.f32 %v741, %v768
        %v790 = vsub.f32 %v742, %v770
        %v791 = vsub.f32 %v743, %v772
        %v792 = vsub.f32 %v744, %v774
        %v793 = vsub.f32 %v745, %v776
        %v794 = vsub.f32 %v746, %v778
        %v795 = vmul.f32 %v779, 1.442695
        %v796 = vpow.pop %v795
        %v797 = vmul.f32 %v780, 1.442695
        %v798 = vpow.pop %v797
        %v799 = vmul.f32 %v781, 1.442695
        %v800 = vpow.pop %v799
        %v801 = vmul.f32 %v782, 1.442695
        %v802 = vpow.pop %v801
        %v803 = vmul.f32 %v783, 1.442695
        %v804 = vpow.pop %v803
        %v805 = vmul.f32 %v784, 1.442695
        %v806 = vpow.pop %v805
        %v807 = vmul.f32 %v785, 1.442695
        %v808 = vpow.pop %v807
        %v809 = vmul.f32 %v786, 1.442695
        %v810 = vpow.pop %v809
        %v811 = vmul.f32 %v787, 1.442695
        %v812 = vpow.pop %v811
        %v813 = vmul.f32 %v788, 1.442695
        %v814 = vpow.pop %v813
        %v815 = vmul.f32 %v789, 1.442695
        %v816 = vpow.pop %v815
        %v817 = vmul.f32 %v790, 1.442695
        %v818 = vpow.pop %v817
        %v819 = vmul.f32 %v791, 1.442695
        %v820 = vpow.pop %v819
        %v821 = vmul.f32 %v792, 1.442695
        %v822 = vpow.pop %v821
        %v823 = vmul.f32 %v793, 1.442695
        %v824 = vpow.pop %v823
        %v825 = vmul.f32 %v794, 1.442695
        %v826 = vpow.pop %v825
        %827 = vadd.xlane.f32.xlu0 %v796
        %v828 = vpop.xlane.xlu0 %827
        %829 = vadd.xlane.f32.xlu0 %v798
        %v830 = vpop.xlane.xlu0 %829
        %831 = vadd.xlane.f32.xlu0 %v800
        %v832 = vpop.xlane.xlu0 %831
        %833 = vadd.xlane.f32.xlu0 %v802
        %v834 = vpop.xlane.xlu0 %833
        %835 = vadd.xlane.f32.xlu0 %v804
        %v836 = vpop.xlane.xlu0 %835
        %837 = vadd.xlane.f32.xlu0 %v806
        %v838 = vpop.xlane.xlu0 %837
        %839 = vadd.xlane.f32.xlu0 %v808
        %v840 = vpop.xlane.xlu0 %839
        %841 = vadd.xlane.f32.xlu0 %v810
        %v842 = vpop.xlane.xlu0 %841
        %843 = vadd.xlane.f32.xlu0 %v812
        %v844 = vpop.xlane.xlu0 %843
        %845 = vadd.xlane.f32.xlu0 %v814
        %v846 = vpop.xlane.xlu0 %845
        %847 = vadd.xlane.f32.xlu0 %v816
        %v848 = vpop.xlane.xlu0 %847
        %849 = vadd.xlane.f32.xlu0 %v818
        %v850 = vpop.xlane.xlu0 %849
        %851 = vadd.xlane.f32.xlu0 %v820
        %v852 = vpop.xlane.xlu0 %851
        %853 = vadd.xlane.f32.xlu0 %v822
        %v854 = vpop.xlane.xlu0 %853
        %855 = vadd.xlane.f32.xlu0 %v824
        %v856 = vpop.xlane.xlu0 %855
        %857 = vadd.xlane.f32.xlu0 %v826
        %v858 = vpop.xlane.xlu0 %857
        %v859 = vrcp.pop %v828
        %v860 = vrcp.pop %v830
        %v861 = vrcp.pop %v832
        %v862 = vrcp.pop %v834
        %v863 = vrcp.pop %v836
        %v864 = vrcp.pop %v838
        %v865 = vrcp.pop %v840
        %v866 = vrcp.pop %v842
        %v867 = vrcp.pop %v844
        %v868 = vrcp.pop %v846
        %v869 = vrcp.pop %v848
        %v870 = vrcp.pop %v850
        %v871 = vrcp.pop %v852
        %v872 = vrcp.pop %v854
        %v873 = vrcp.pop %v856
        %v874 = vrcp.pop %v858
        %v875 = vmul.f32 %v796, %v859
        %v876 = vmul.f32 %v798, %v860
        %v877 = vmul.f32 %v800, %v861
        %v878 = vmul.f32 %v802, %v862
        %v879 = vmul.f32 %v804, %v863
        %v880 = vmul.f32 %v806, %v864
        %v881 = vmul.f32 %v808, %v865
        %v882 = vmul.f32 %v810, %v866
        %v883 = vmul.f32 %v812, %v867
        %v884 = vmul.f32 %v814, %v868
        %v885 = vmul.f32 %v816, %v869
        %v886 = vmul.f32 %v818, %v870
        %v887 = vmul.f32 %v820, %v871
        %v888 = vmul.f32 %v822, %v872
        %v889 = vmul.f32 %v824, %v873
        %v890 = vmul.f32 %v826, %v874
        %vm891 = vcmp.eq.s32.totalorder %v729, 8
        %v892 = vsel %vm891, %v650, 0.0
        %v893 = vsel %vm891, %v655, 0.0
        %v894 = vsel %vm891, %v660, 0.0
        %v895 = vsel %vm891, %v665, 0.0
        %v896 = vsel %vm891, %v670, 0.0
        %v897 = vsel %vm891, %v675, 0.0
        %v898 = vsel %vm891, %v680, 0.0
        %v899 = vsel %vm891, %v685, 0.0
        %v900 = vsel %vm891, %v690, 0.0
        %v901 = vsel %vm891, %v695, 0.0
        %v902 = vsel %vm891, %v700, 0.0
        %v903 = vsel %vm891, %v705, 0.0
        %v904 = vsel %vm891, %v710, 0.0
        %v905 = vsel %vm891, %v715, 0.0
        %v906 = vsel %vm891, %v720, 0.0
        %v907 = vsel %vm891, %v725, 0.0
        %v908 = vadd.f32 %v875, %v892
        %v909 = vadd.f32 %v876, %v893
        %v910 = vadd.f32 %v877, %v894
        %v911 = vadd.f32 %v878, %v895
        %v912 = vadd.f32 %v879, %v896
        %v913 = vadd.f32 %v880, %v897
        %v914 = vadd.f32 %v881, %v898
        %v915 = vadd.f32 %v882, %v899
        %v916 = vadd.f32 %v883, %v900
        %v917 = vadd.f32 %v884, %v901
        %v918 = vadd.f32 %v885, %v902
        %v919 = vadd.f32 %v886, %v903
        %v920 = vadd.f32 %v887, %v904
        %v921 = vadd.f32 %v888, %v905
        %v922 = vadd.f32 %v889, %v906
        %v923 = vadd.f32 %v890, %v907
        %924 = vst [vmem:[%s137] sm:$0xff] %v908
        %925 = vst [vmem:[%s137 + $0x8] sm:$0xff] %v909
        %926 = vst [vmem:[%s137 + $0x10] sm:$0xff] %v910
        %927 = vst [vmem:[%s137 + $0x18] sm:$0xff] %v911
        %928 = vst [vmem:[%s137 + $0x20] sm:$0xff] %v912
        %929 = vst [vmem:[%s137 + $0x28] sm:$0xff] %v913
        %930 = vst [vmem:[%s137 + $0x30] sm:$0xff] %v914
        %931 = vst [vmem:[%s137 + $0x38] sm:$0xff] %v915
        %932 = vst [vmem:[%s137 + $0x40] sm:$0xff] %v916
        %933 = vst [vmem:[%s137 + $0x48] sm:$0xff] %v917
        %934 = vst [vmem:[%s137 + $0x50] sm:$0xff] %v918
        %935 = vst [vmem:[%s137 + $0x58] sm:$0xff] %v919
        %936 = vst [vmem:[%s137 + $0x60] sm:$0xff] %v920
        %937 = vst [vmem:[%s137 + $0x68] sm:$0xff] %v921
        %938 = vst [vmem:[%s137 + $0x70] sm:$0xff] %v922
        %939 = vst [vmem:[%s137 + $0x78] sm:$0xff] %v923
        %s940 = sand.u32 %s71, 1
        %s941 = scalar_lea.sflag [#allocation3], %s940
        %s942 = sand.u32 %s71, 1
        %s943 = smul.addr %s942, 128
        %s944 = scalar_lea.vmem [#allocation2], %s943
        // Predicated region
        $region29: #{tpu_custom_call.1} parent=27 // pred_check
          %p945 = pneg %p81
        $region30: #{tpu_custom_call.1} parent=27 // pred_check_branch
          %947 = sbr.rel (%p945) target = $region32
        $region31: #{tpu_custom_call.1} parent=27 // pred_region
          %s948 = smul.u32 16, %s16
          %s950 = ssub.s32 2048, 2048
          %951 = vsyncadd %s941, %s950
          %s952 = smul.addr %s948, 128
          %s953 = scalar_lea.hbm %s2, %s952
          %s954 = sshll.u32 %s944, 4
          %s955 = int_to_ptr.vmem [resolvable:$true] %s954
          %960 = dma.vmem_to_hbm [thread:$0]  %s955, 2048, %s953, %s941, 128, 128, 8
        $region32: #{tpu_custom_call.1} parent=27 // pred_fallthru
          _
      $region28: #{tpu_custom_call.1} parent=5 // pred_fallthru
        _
      %p961 = scmp.le.s32.totalorder 2, %s11
      // Predicated region
      $region33: #{tpu_custom_call.1} parent=5 // pred_check
        %p962 = pneg %p961
      $region34: #{tpu_custom_call.1} parent=5 // pred_check_branch
        %964 = sbr.rel (%p962) target = $region36
      $region35: #{tpu_custom_call.1} parent=5 // pred_region
        %s965 = ssub.s32 %s11, 2
        // Predicated region
        $region37: #{tpu_custom_call.1} parent=35 // pred_check
          %p966 = pneg %p87
        $region38: #{tpu_custom_call.1} parent=35 // pred_check_branch
          %968 = sbr.rel (%p966) target = $region40
        $region39: #{tpu_custom_call.1} parent=35 // pred_region
          %s969 = sand.u32 %s72, 1
          %s970 = scalar_lea.sflag [#allocation3], %s969
          %s971 = sand.u32 %s72, 1
          %s972 = smul.addr %s971, 128
          %s973 = scalar_lea.vmem [#allocation2], %s972
          %974 = dma.done %s970, 2048
        $region40: #{tpu_custom_call.1} parent=35 // pred_fallthru
          _
      $region36: #{tpu_custom_call.1} parent=5 // pred_fallthru
        _
    $region6: #{tpu_custom_call.1} parent=1 // loop_footer
      %s15 = sadd.s32 1, %s11
    $region7: #{tpu_custom_call.1} parent=1 // loop_footer_branch
      %10 = sbr.rel target = $region3
    $region8: #{tpu_custom_call.1} parent=1 // loop_exit
      _
    %975 = vsyncpa [#allocation3], 1
    %s976 = scalar_lea.sflag [#allocation3], 1
    %977 = vsyncpa %s976, 1

</llo_original>
